<compile_context>
chip_gen: v5e
topology: v5e:2x2
jax: 0.10.0
libtpu: 0.0.40
codegen_flags: <defaults>
</compile_context>

<pallas_src>
import functools

import jax
import jax.numpy as jnp
from jax.experimental import pallas as pl
from jax.experimental.pallas import tpu as pltpu


def _conv_stats_kernel(pT_ref, wT_ref, yT_ref, sum_ref, sumsq_ref):
    """One M-tile: yT = wT @ patchesT on the MXU (bf16 in, f32 out) and
    accumulate per-channel sum / sum-of-squares into resident accumulators."""
    mi = pl.program_id(0)

    y = jnp.dot(wT_ref[...], pT_ref[...],
                preferred_element_type=jnp.float32)      # (C_out, block_m) f32
    yT_ref[...] = y

    @pl.when(mi == 0)
    def _():
        sum_ref[...] = jnp.zeros_like(sum_ref)
        sumsq_ref[...] = jnp.zeros_like(sumsq_ref)

    # Single-pass stats: per-channel sum and sum of squares (lane reduction -> XLU).
    sum_ref[...] += jnp.sum(y, axis=1, keepdims=True)
    sumsq_ref[...] += jnp.sum(y * y, axis=1, keepdims=True)


def _bn_normalize_kernel(yT_ref, sum_ref, sumsq_ref, gamma_ref, beta_ref, out_ref,
                         *, m_true, eps):
    """Normalize one lane-dense (C_out, block_m) tile with the global batch stats."""
    mean = sum_ref[...] / m_true                                   # (C_out, 1)
    var = jnp.maximum(sumsq_ref[...] / m_true - mean * mean, 0.0)  # clamp cancellation
    inv = jax.lax.rsqrt(var + eps)
    scale = gamma_ref[...] * inv                                   # (C_out, 1)
    shift = beta_ref[...] - mean * scale                           # (C_out, 1)
    out_ref[...] = (yT_ref[...] * scale + shift).astype(out_ref.dtype)


def conv_block_forward(x, w, b, gamma, beta, *, stride=1, padding=0, eps=1e-5,
                       block_m=512):
    """x: (N, C_in, H, W); w: (C_out, C_in, k, k); b/gamma/beta: (C_out,)."""
    N, C_in, H, W = x.shape
    C_out, _, k, _ = w.shape

    if padding > 0:
        x = jnp.pad(x, ((0, 0), (0, 0), (padding, padding), (padding, padding)))
    Hp, Wp = x.shape[2], x.shape[3]
    OH = (Hp - k) // stride + 1
    OW = (Wp - k) // stride + 1
    M = N * OH * OW
    K = C_in * k * k

    # --- im2col, built directly in the transposed (K, M) layout ---------------
    # Feature (row) order (c_in, kh, kw) matches PyTorch's OIHW weight flatten;
    # column order is (n, oh, ow).
    cols = []
    for kh in range(k):
        for kw in range(k):
            cols.append(x[:, :,
                          kh:kh + (OH - 1) * stride + 1:stride,
                          kw:kw + (OW - 1) * stride + 1:stride])    # (N, C_in, OH, OW)
    cols = jnp.stack(cols, axis=0)                                  # (k*k, N, C_in, OH, OW)
    patches_t = cols.transpose(2, 0, 1, 3, 4).reshape(K, M)         # (K, M)
    # TODO(synk): im2col-free variant — DMA shifted NHWC windows inside the kernel
    # and accumulate per-(kh,kw) dots — would cut HBM traffic ~k*k-fold at real sizes.

    # --- padding / dtypes ------------------------------------------------------
    K_pad = ((K + 15) // 16) * 16                 # bf16 sublane multiple
    block_m = max(128, (block_m // 128) * 128)    # lane-aligned tile
    num_m = (M + block_m - 1) // block_m
    M_pad = num_m * block_m

    patches_t = jnp.pad(patches_t,
                        ((0, K_pad - K), (0, M_pad - M))).astype(jnp.bfloat16)
    w_t = jnp.pad(w.reshape(C_out, K).astype(jnp.float32),
                  ((0, 0), (0, K_pad - K))).astype(jnp.bfloat16)     # (C_out, K_pad)
    g2 = gamma.reshape(C_out, 1).astype(jnp.float32)
    be2 = beta.reshape(C_out, 1).astype(jnp.float32)
    # Conv bias is exactly cancelled by training-mode BN mean subtraction -> dropped.
    del b

    # --- pass 1: conv matmul (lane-dense tiles) + BN sum / sumsq ---------------
    yT, ch_sum, ch_sumsq = pl.pallas_call(
        _conv_stats_kernel,
        out_shape=(jax.ShapeDtypeStruct((C_out, M_pad), jnp.float32),
                   jax.ShapeDtypeStruct((C_out, 1), jnp.float32),
                   jax.ShapeDtypeStruct((C_out, 1), jnp.float32)),
        grid=(num_m,),
        in_specs=[
            pl.BlockSpec((K_pad, block_m), lambda m: (0, m)),
            pl.BlockSpec((C_out, K_pad), lambda m: (0, 0)),
        ],
        out_specs=(
            pl.BlockSpec((C_out, block_m), lambda m: (0, m)),
            pl.BlockSpec((C_out, 1), lambda m: (0, 0)),   # resident accumulator
            pl.BlockSpec((C_out, 1), lambda m: (0, 0)),   # resident accumulator
        ),
        compiler_params=pltpu.CompilerParams(
            dimension_semantics=("arbitrary",)),          # stats reduce over M tiles
        cost_estimate=pl.CostEstimate(
            flops=2 * C_out * K_pad * M_pad,
            transcendentals=0,
            bytes_accessed=(patches_t.size * 2 + w_t.size * 2
                            + C_out * M_pad * 4 + 2 * C_out * 4)),
    )(patches_t, w_t)

    # --- pass 2: normalize each tile (independent -> "parallel") ---------------
    out_t = pl.pallas_call(
        functools.partial(_bn_normalize_kernel, m_true=float(M), eps=eps),
        out_shape=jax.ShapeDtypeStruct((C_out, M_pad), jnp.float32),
        grid=(num_m,),
        in_specs=[
            pl.BlockSpec((C_out, block_m), lambda m: (0, m)),
            pl.BlockSpec((C_out, 1), lambda m: (0, 0)),
            pl.BlockSpec((C_out, 1), lambda m: (0, 0)),
            pl.BlockSpec((C_out, 1), lambda m: (0, 0)),
            pl.BlockSpec((C_out, 1), lambda m: (0, 0)),
        ],
        out_specs=pl.BlockSpec((C_out, block_m), lambda m: (0, m)),
        compiler_params=pltpu.CompilerParams(
            dimension_semantics=("parallel",)),
    )(yT, ch_sum, ch_sumsq, g2, be2)

    # (C_out, M) -> NCHW
    return out_t[:, :M].reshape(C_out, N, OH, OW).transpose(1, 0, 2, 3)


def reference(x, w, b, gamma, beta, *, stride, padding, eps=1e-5):
    y = jax.lax.conv_general_dilated(
        x.astype(jnp.float32), w.astype(jnp.float32),
        window_strides=(stride, stride),
        padding=[(padding, padding), (padding, padding)],
        dimension_numbers=("NCHW", "OIHW", "NCHW"),
    ) + b.reshape(1, -1, 1, 1)
    mean = y.mean(axis=(0, 2, 3), keepdims=True)
    var = ((y - mean) ** 2).mean(axis=(0, 2, 3), keepdims=True)
    return (y - mean) / jnp.sqrt(var + eps) * gamma.reshape(1, -1, 1, 1) \
        + beta.reshape(1, -1, 1, 1)


if __name__ == "__main__":
    # ConvBlock(in_c=4, out_c=8, k=3, s=1, p=0) on a (2, 4, 16, 16) input.
    N, C_in, H, W = 2, 4, 16, 16
    C_out, k, s, p = 8, 3, 1, 0

    key = jax.random.PRNGKey(0)
    kx, kw, kb = jax.random.split(key, 3)

    x = jax.random.normal(kx, (N, C_in, H, W), dtype=jnp.float32)
    fan_in = C_in * k * k
    bound = 1.0 / (fan_in ** 0.5)
    w = jax.random.uniform(kw, (C_out, C_in, k, k), jnp.float32, -bound, bound)
    b = jax.random.uniform(kb, (C_out,), jnp.float32, -bound, bound)
    gamma = jnp.ones((C_out,), jnp.float32)
    beta = jnp.zeros((C_out,), jnp.float32)

    # block_m=128 -> M=392 padded to 512 -> 4 tiles, exercising the tiled
    # accumulation / normalization path (default block_m=512 for larger shapes).
    out = conv_block_forward(x, w, b, gamma, beta, stride=s, padding=p, block_m=128)
    out = jax.block_until_ready(out)

    ref = reference(x, w, b, gamma, beta, stride=s, padding=p)
    assert out.shape == ref.shape, (out.shape, ref.shape)
    # bf16 MXU operands (f32 accumulation) -> tolerance sized for bf16 rounding.
    assert jnp.allclose(out, ref, atol=2e-2, rtol=2e-2), \
        float(jnp.max(jnp.abs(out - ref)))

    print("KERNEL_OK")
</pallas_src>

<mosaic_0001>
module attributes {stable_mosaic.version = 11 : i64} {
  func.func @_conv_stats_kernel(%arg0: i32, %arg1: memref<48x128xbf16, #tpu.memory_space<vmem>>, %arg2: memref<8x48xbf16, #tpu.memory_space<vmem>>, %arg3: memref<8x128xf32, #tpu.memory_space<vmem>>, %arg4: memref<8x1xf32, #tpu.memory_space<vmem>>, %arg5: memref<8x1xf32, #tpu.memory_space<vmem>>) attributes {dimension_semantics = [#tpu.dimension_semantics<arbitrary>], iteration_bounds = array<i64: 4>, scalar_prefetch = 0 : i64, scratch_operands = 0 : i64, tpu.core_type = #tpu.core_type<tc>, window_params = [{transform_indices = @transform_0, window_bounds = array<i64: 48, 128>}, {pipeline_mode = #tpu.pipeline_mode<synchronous>, transform_indices = @transform_1, window_bounds = array<i64: 8, 48>}, {transform_indices = @transform_2, window_bounds = array<i64: 8, 128>}, {pipeline_mode = #tpu.pipeline_mode<synchronous>, transform_indices = @transform_3, window_bounds = array<i64: 8, 1>}, {pipeline_mode = #tpu.pipeline_mode<synchronous>, transform_indices = @transform_4, window_bounds = array<i64: 8, 1>}]} {
    %c0 = arith.constant 0 : index
    %c0_0 = arith.constant 0 : index
    %0 = vector.load %arg2[%c0, %c0_0] : memref<8x48xbf16, #tpu.memory_space<vmem>>, vector<8x48xbf16>
    %c0_1 = arith.constant 0 : index
    %c0_2 = arith.constant 0 : index
    %1 = vector.load %arg1[%c0_1, %c0_2] : memref<48x128xbf16, #tpu.memory_space<vmem>>, vector<48x128xbf16>
    %cst = arith.constant dense<0.000000e+00> : vector<8x128xf32>
    %2 = tpu.matmul %0, %1, %cst {dimension_numbers = #tpu.dot_dimension_numbers<[1], [0], [0], [1], [0, 0, 1, 1], [], []>} : vector<8x48xbf16>, vector<48x128xbf16>, vector<8x128xf32> -> vector<8x128xf32>
    %c0_3 = arith.constant 0 : index
    %c0_4 = arith.constant 0 : index
    %3 = vector.load %arg3[%c0_3, %c0_4] : memref<8x128xf32, #tpu.memory_space<vmem>>, vector<8x128xf32>
    tpu.vector_store %arg3[%c0_3, %c0_4], %2 {strides = array<i32>} : memref<8x128xf32, #tpu.memory_space<vmem>>, vector<8x128xf32>,
    %c0_i32 = arith.constant 0 : i32
    %4 = arith.cmpi eq, %arg0, %c0_i32 : i32
    %5 = arith.extui %4 : i1 to i32
    %c0_i32_5 = arith.constant 0 : i32
    %6 = arith.cmpi ne, %5, %c0_i32_5 : i32
    scf.if %6 {
      %cst_16 = arith.constant 0.000000e+00 : f32
      %18 = vector.broadcast %cst_16 : f32 to vector<8x1xf32>
      %c0_17 = arith.constant 0 : index
      %c0_18 = arith.constant 0 : index
      %19 = vector.load %arg4[%c0_17, %c0_18] : memref<8x1xf32, #tpu.memory_space<vmem>>, vector<8x1xf32>
      tpu.vector_store %arg4[%c0_17, %c0_18], %18 {strides = array<i32>} : memref<8x1xf32, #tpu.memory_space<vmem>>, vector<8x1xf32>,
      %cst_19 = arith.constant 0.000000e+00 : f32
      %20 = vector.broadcast %cst_19 : f32 to vector<8x1xf32>
      %c0_20 = arith.constant 0 : index
      %c0_21 = arith.constant 0 : index
      %21 = vector.load %arg5[%c0_20, %c0_21] : memref<8x1xf32, #tpu.memory_space<vmem>>, vector<8x1xf32>
      tpu.vector_store %arg5[%c0_20, %c0_21], %20 {strides = array<i32>} : memref<8x1xf32, #tpu.memory_space<vmem>>, vector<8x1xf32>,
    } else {
    }
    %c0_6 = arith.constant 0 : index
    %c0_7 = arith.constant 0 : index
    %7 = vector.load %arg4[%c0_6, %c0_7] : memref<8x1xf32, #tpu.memory_space<vmem>>, vector<8x1xf32>
    %cst_8 = arith.constant dense<0.000000e+00> : vector<8xf32>
    %8 = vector.multi_reduction <add>, %2, %cst_8 [1] : vector<8x128xf32> to vector<8xf32>
    %9 = vector.shape_cast %8 : vector<8xf32> to vector<8x1xf32>
    %10 = arith.addf %7, %9 : vector<8x1xf32>
    %c0_9 = arith.constant 0 : index
    %c0_10 = arith.constant 0 : index
    %11 = vector.load %arg4[%c0_9, %c0_10] : memref<8x1xf32, #tpu.memory_space<vmem>>, vector<8x1xf32>
    tpu.vector_store %arg4[%c0_9, %c0_10], %10 {strides = array<i32>} : memref<8x1xf32, #tpu.memory_space<vmem>>, vector<8x1xf32>,
    %c0_11 = arith.constant 0 : index
    %c0_12 = arith.constant 0 : index
    %12 = vector.load %arg5[%c0_11, %c0_12] : memref<8x1xf32, #tpu.memory_space<vmem>>, vector<8x1xf32>
    %13 = arith.mulf %2, %2 : vector<8x128xf32>
    %cst_13 = arith.constant dense<0.000000e+00> : vector<8xf32>
    %14 = vector.multi_reduction <add>, %13, %cst_13 [1] : vector<8x128xf32> to vector<8xf32>
    %15 = vector.shape_cast %14 : vector<8xf32> to vector<8x1xf32>
    %16 = arith.addf %12, %15 : vector<8x1xf32>
    %c0_14 = arith.constant 0 : index
    %c0_15 = arith.constant 0 : index
    %17 = vector.load %arg5[%c0_14, %c0_15] : memref<8x1xf32, #tpu.memory_space<vmem>>, vector<8x1xf32>
    tpu.vector_store %arg5[%c0_14, %c0_15], %16 {strides = array<i32>} : memref<8x1xf32, #tpu.memory_space<vmem>>, vector<8x1xf32>,
    return
  }
  func.func @transform_0(%arg0: i32) -> (i32, i32) {
    %c0_i32 = arith.constant 0 : i32
    %c0_i32_0 = arith.constant 0 : i32
    return %c0_i32, %arg0 : i32, i32
  }
  func.func @transform_1(%arg0: i32) -> (i32, i32) {
    %c0_i32 = arith.constant 0 : i32
    %c0_i32_0 = arith.constant 0 : i32
    %c0_i32_1 = arith.constant 0 : i32
    return %c0_i32, %c0_i32_0 : i32, i32
  }
  func.func @transform_2(%arg0: i32) -> (i32, i32) {
    %c0_i32 = arith.constant 0 : i32
    %c0_i32_0 = arith.constant 0 : i32
    return %c0_i32, %arg0 : i32, i32
  }
  func.func @transform_3(%arg0: i32) -> (i32, i32) {
    %c0_i32 = arith.constant 0 : i32
    %c0_i32_0 = arith.constant 0 : i32
    %c0_i32_1 = arith.constant 0 : i32
    return %c0_i32, %c0_i32_0 : i32, i32
  }
  func.func @transform_4(%arg0: i32) -> (i32, i32) {
    %c0_i32 = arith.constant 0 : i32
    %c0_i32_0 = arith.constant 0 : i32
    %c0_i32_1 = arith.constant 0 : i32
    return %c0_i32, %c0_i32_0 : i32, i32
  }
}

</mosaic_0001>

<llo_original>
// kernel: tpu_custom_call.1
$region0: #{tpu_custom_call.1}
  #allocation0 [shape = 'u32[]', space=smem, size = 0x4, offset = 0x4, fixed_abs, tag = 'smem constant byte address 0x4 - core index']
  #allocation1 [shape = 'u32[72,128]{1,0:T(1,128)}', space=vmem, size = 0x9000, scoped, tag = 'internal scratch']
  %s0 = inlined_call_operand.hbm [shape: bf16[48,512], index: 0, kind: input, shape index: {}]
  %s1 = inlined_call_operand.hbm [shape: bf16[8,48], index: 1, kind: input, shape index: {}]
  %s2 = inlined_call_operand.hbm [shape: f32[8,512], index: 2, kind: output, shape index: {0}]
  %s3 = inlined_call_operand.vmem [shape: f32[8,1], index: 3, kind: output, shape index: {1}]
  %s4 = inlined_call_operand.vmem [shape: f32[8,1], index: 4, kind: output, shape index: {2}]
  %5 = xla_tuple %s2, %s3, %s4
  %s6 = sld [smem:[#allocation0]]
  $region69: #{tpu_custom_call.1} parent=0
    _
  %s8 = ssub.s32 1, %s6
  %s9 = scalar_select 0, %s8, %s6
  $region1: #{tpu_custom_call.1} parent=0
    #allocation2 [shape = 'u8[24576]{0}', space=vmem, size = 0x6000, scoped, tag = 'input window, operand 0']
    #allocation3 [shape = 's32[2]{0}', space=sflag, size = 0x8, scoped, tag = 'scoped memory for tpu_custom_call.1']
    #allocation4 [shape = 's32[2]{0}', space=sflag, size = 0x8, scoped, tag = 'scoped memory for tpu_custom_call.1']
    #allocation5 [shape = 'u8[2048]{0}', space=vmem, size = 0x800, scoped, tag = 'input window, operand 1, single buffered']
    #allocation6 [shape = 's32[1]{0}', space=sflag, size = 0x4, scoped, tag = 'scoped memory for tpu_custom_call.1']
    #allocation7 [shape = 'u8[8192]{0}', space=vmem, size = 0x2000, scoped, tag = 'output window, operand 0']
    %10 = vsyncpa [#allocation3], 0
    %s11 = scalar_lea.sflag [#allocation3], 1
    %12 = vsyncpa %s11, 0
    %13 = vsyncpa [#allocation6], 0
    %14 = vsyncpa [#allocation4], 0
    %s15 = scalar_lea.sflag [#allocation4], 1
    %16 = vsyncpa %s15, 0
    loop: start=0, step=1, limit=6
    $region2: #{tpu_custom_call.1} parent=1 // loop_pre_header
      _
    $region3: #{tpu_custom_call.1} parent=1 // loop_header
      %s18 = sphi 0, %s22
      %p19 = scmp.ge.s32.totalorder %s18, 6
      %s28 = sphi 0, %s30
      %s31 = sphi 0, %s28
      %s32 = sphi 0, %s31
      %s48 = sphi 0, %s32
      %s52 = sphi 0, %s52
      %s54 = sphi 0, %s52
      %s55 = sphi 0, %s54
      %s69 = sphi 0, %s55
      %s75 = sphi 0, %s77
      %s78 = sphi 0, %s75
      %s79 = sphi 0, %s78
      %s95 = sphi 0, %s79
      %s99 = sphi 0, %s99
      %s101 = sphi 0, %s99
      %s102 = sphi 0, %s101
      %s116 = sphi 0, %s102
      %s120 = sphi 0, %s120
      %s122 = sphi 0, %s120
      %s123 = sphi 0, %s122
      %s137 = sphi 0, %s123
    $region4: #{tpu_custom_call.1} parent=1 // loop_header_branch
      %21 = sbr.rel (%p19) target = $region8
    $region5: #{tpu_custom_call.1} parent=1 // loop_body
      %s23 = ssub.s32 %s18, 1
      %s24 = ssub.s32 %s18, 2
      %s25 = sadd.s32 %s18, 1
      %s26 = ssub.s32 %s18, %s25
      %p27 = scmp.eq.s32.totalorder %s26, 0
      %s29 = sadd.s32 %s28, 1
      %s30 = scalar_select %p27, %s28, %s29
      %p33 = pneg %p27
      %p34 = scmp.eq.s32.totalorder %s18, 3
      %p35 = por %p33, %p34
      %p36 = scmp.ne.s32.totalorder %s28, %s31
      %p37 = scmp.eq.s32.totalorder %s18, 0
      %p38 = por %p36, %p37
      %p39 = scmp.ne.s32.totalorder %s28, %s31
      %p40 = scmp.eq.s32.totalorder %s23, 3
      %p41 = por %p39, %p40
      %p42 = scmp.ne.s32.totalorder %s31, %s32
      %p43 = scmp.eq.s32.totalorder %s23, 0
      %p44 = por %p42, %p43
      %p45 = scmp.ne.s32.totalorder %s31, %s32
      %p46 = scmp.eq.s32.totalorder %s24, 3
      %p47 = por %p45, %p46
      %p49 = scmp.ne.s32.totalorder %s32, %s48
      %p50 = scmp.eq.s32.totalorder %s24, 0
      %p51 = por %p49, %p50
      %s53 = sadd.s32 %s52, 1
      %p56 = scmp.eq.s32.totalorder %s18, 3
      %p57 = scmp.ne.s32.totalorder %s52, %s54
      %p58 = scmp.eq.s32.totalorder %s18, 0
      %p59 = por %p57, %p58
      %p60 = scmp.ne.s32.totalorder %s52, %s54
      %p61 = scmp.eq.s32.totalorder %s23, 3
      %p62 = por %p60, %p61
      %p63 = scmp.ne.s32.totalorder %s54, %s55
      %p64 = scmp.eq.s32.totalorder %s23, 0
      %p65 = por %p63, %p64
      %p66 = scmp.ne.s32.totalorder %s54, %s55
      %p67 = scmp.eq.s32.totalorder %s24, 3
      %p68 = por %p66, %p67
      %p70 = scmp.ne.s32.totalorder %s55, %s69
      %p71 = scmp.eq.s32.totalorder %s24, 0
      %p72 = por %p70, %p71
      %s73 = ssub.s32 %s18, %s25
      %p74 = scmp.eq.s32.totalorder %s73, 0
      %s76 = sadd.s32 %s75, 1
      %s77 = scalar_select %p74, %s75, %s76
      %p80 = pneg %p74
      %p81 = scmp.eq.s32.totalorder %s18, 3
      %p82 = por %p80, %p81
      %p83 = scmp.ne.s32.totalorder %s75, %s78
      %p84 = scmp.eq.s32.totalorder %s18, 0
      %p85 = por %p83, %p84
      %p86 = scmp.ne.s32.totalorder %s75, %s78
      %p87 = scmp.eq.s32.totalorder %s23, 3
      %p88 = por %p86, %p87
      %p89 = scmp.ne.s32.totalorder %s78, %s79
      %p90 = scmp.eq.s32.totalorder %s23, 0
      %p91 = por %p89, %p90
      %p92 = scmp.ne.s32.totalorder %s78, %s79
      %p93 = scmp.eq.s32.totalorder %s24, 3
      %p94 = por %p92, %p93
      %p96 = scmp.ne.s32.totalorder %s79, %s95
      %p97 = scmp.eq.s32.totalorder %s24, 0
      %p98 = por %p96, %p97
      %s100 = sadd.s32 %s99, 1
      %p103 = scmp.eq.s32.totalorder %s18, 3
      %p104 = scmp.ne.s32.totalorder %s99, %s101
      %p105 = scmp.eq.s32.totalorder %s18, 0
      %p106 = por %p104, %p105
      %p107 = scmp.ne.s32.totalorder %s99, %s101
      %p108 = scmp.eq.s32.totalorder %s23, 3
      %p109 = por %p107, %p108
      %p110 = scmp.ne.s32.totalorder %s101, %s102
      %p111 = scmp.eq.s32.totalorder %s23, 0
      %p112 = por %p110, %p111
      %p113 = scmp.ne.s32.totalorder %s101, %s102
      %p114 = scmp.eq.s32.totalorder %s24, 3
      %p115 = por %p113, %p114
      %p117 = scmp.ne.s32.totalorder %s102, %s116
      %p118 = scmp.eq.s32.totalorder %s24, 0
      %p119 = por %p117, %p118
      %s121 = sadd.s32 %s120, 1
      %p124 = scmp.eq.s32.totalorder %s18, 3
      %p125 = scmp.ne.s32.totalorder %s120, %s122
      %p126 = scmp.eq.s32.totalorder %s18, 0
      %p127 = por %p125, %p126
      %p128 = scmp.ne.s32.totalorder %s120, %s122
      %p129 = scmp.eq.s32.totalorder %s23, 3
      %p130 = por %p128, %p129
      %p131 = scmp.ne.s32.totalorder %s122, %s123
      %p132 = scmp.eq.s32.totalorder %s23, 0
      %p133 = por %p131, %p132
      %p134 = scmp.ne.s32.totalorder %s122, %s123
      %p135 = scmp.eq.s32.totalorder %s24, 3
      %p136 = por %p134, %p135
      %p138 = scmp.ne.s32.totalorder %s123, %s137
      %p139 = scmp.eq.s32.totalorder %s24, 0
      %p140 = por %p138, %p139
      %p141 = scmp.le.s32.totalorder 1, %s18
      %p142 = scmp.lt.s32.totalorder %s18, 5
      %p143 = pnand %p141, %p142
      %p144 = pneg %p143
      // Predicated region
      $region9: #{tpu_custom_call.1} parent=5 // pred_check
        _
      $region10: #{tpu_custom_call.1} parent=5 // pred_check_branch
        %146 = sbr.rel (%p143) target = $region12
      $region11: #{tpu_custom_call.1} parent=5 // pred_region
        %s147 = ssub.s32 %s18, 1
        // Predicated region
        $region13: #{tpu_custom_call.1} parent=11 // pred_check
          %p148 = pneg %p65
        $region14: #{tpu_custom_call.1} parent=11 // pred_check_branch
          %150 = sbr.rel (%p148) target = $region16
        $region15: #{tpu_custom_call.1} parent=11 // pred_region
          %152 = vsyncadd [#allocation6], 0
          %s154 = sshll.u32 %s1, 4
          %s155 = int_to_ptr.hbm [resolvable:$true] %s154
          %s156 = sshll.u32 [#allocation5], 4
          %s157 = int_to_ptr.vmem [resolvable:$true] %s156
          %159 = dma.hbm_to_vmem [thread:$0]  %s155, 64, %s157, [#allocation6]
        $region16: #{tpu_custom_call.1} parent=11 // pred_fallthru
          _
      $region12: #{tpu_custom_call.1} parent=5 // pred_fallthru
        _
      %p160 = scmp.lt.s32.totalorder %s18, 4
      // Predicated region
      $region17: #{tpu_custom_call.1} parent=5 // pred_check
        %p161 = pneg %p160
      $region18: #{tpu_custom_call.1} parent=5 // pred_check_branch
        %163 = sbr.rel (%p161) target = $region20
      $region19: #{tpu_custom_call.1} parent=5 // pred_region
        // Predicated region
        $region21: #{tpu_custom_call.1} parent=19 // pred_check
          %p164 = pneg %p38
        $region22: #{tpu_custom_call.1} parent=19 // pred_check_branch
          %166 = sbr.rel (%p164) target = $region24
        $region23: #{tpu_custom_call.1} parent=19 // pred_region
          %s167 = sand.u32 %s28, 1
          %s168 = scalar_lea.sflag [#allocation3], %s167
          %s169 = sand.u32 %s28, 1
          %s170 = smul.addr %s169, 24
          %s171 = scalar_lea.vmem [#allocation2], %s170
          %173 = vsyncadd %s168, 0
          %s174 = smul.addr %s18, 4
          %s175 = scalar_lea.hbm %s0, %s174
          %s176 = sshll.u32 %s175, 4
          %s177 = int_to_ptr.hbm [resolvable:$true] %s176
          %s178 = sshll.u32 %s171, 4
          %s179 = int_to_ptr.vmem [resolvable:$true] %s178
          %184 = dma.hbm_to_vmem [thread:$0]  %s177, 384, %s179, %s168, 256, 64, 4
        $region24: #{tpu_custom_call.1} parent=19 // pred_fallthru
          _
      $region20: #{tpu_custom_call.1} parent=5 // pred_fallthru
        _
      %p185 = scmp.le.s32.totalorder 1, %s18
      %p186 = scmp.lt.s32.totalorder %s18, 5
      %p187 = pnand %p185, %p186
      %p188 = pneg %p187
      // Predicated region
      $region25: #{tpu_custom_call.1} parent=5 // pred_check
        _
      $region26: #{tpu_custom_call.1} parent=5 // pred_check_branch
        %190 = sbr.rel (%p187) target = $region28
      $region27: #{tpu_custom_call.1} parent=5 // pred_region
        %s191 = ssub.s32 %s18, 1
        %s192 = sand.u32 %s31, 1
        %s193 = scalar_lea.sflag [#allocation3], %s192
        %s194 = sand.u32 %s31, 1
        %s195 = smul.addr %s194, 24
        %s196 = scalar_lea.vmem [#allocation2], %s195
        // Predicated region
        $region29: #{tpu_custom_call.1} parent=27 // pred_check
          %p197 = pneg %p44
        $region30: #{tpu_custom_call.1} parent=27 // pred_check_branch
          %199 = sbr.rel (%p197) target = $region32
        $region31: #{tpu_custom_call.1} parent=27 // pred_region
          %201 = dma.done %s193, 384
        $region32: #{tpu_custom_call.1} parent=27 // pred_fallthru
          _
        // Predicated region
        $region33: #{tpu_custom_call.1} parent=27 // pred_check
          %p202 = pneg %p65
        $region34: #{tpu_custom_call.1} parent=27 // pred_check_branch
          %204 = sbr.rel (%p202) target = $region36
        $region35: #{tpu_custom_call.1} parent=27 // pred_region
          %206 = dma.done [#allocation6], 64
        $region36: #{tpu_custom_call.1} parent=27 // pred_fallthru
          _
        %s207 = sand.u32 %s31, 1
        %s208 = scalar_lea.sflag [#allocation3], %s207
        %s209 = sand.u32 %s31, 1
        %s210 = smul.addr %s209, 24
        %s211 = scalar_lea.vmem [#allocation2], %s210
        %p212 = pneg %p44
        %p213 = pneg %p41
        %p214 = pneg %p65
        %p215 = pneg %p62
        %p216 = pneg %p91
        %p217 = pneg %p88
        %s218 = sand.u32 %s78, 1
        %s219 = scalar_lea.sflag [#allocation4], %s218
        %s220 = sand.u32 %s78, 1
        %s221 = smul.addr %s220, 8
        %s222 = scalar_lea.vmem [#allocation7], %s221
        %p223 = pneg %p112
        %p224 = pneg %p109
        %p225 = pneg %p133
        %p226 = pneg %p130
        %v228 = vld [vmem:[#allocation5] sm:$0xf]
        %v229 = vld [vmem:[%s196] sm:$0xf]
        %v230 = vld [vmem:[%s196 + $0x4] sm:$0xf]
        %v231 = vld [vmem:[%s196 + $0x8] sm:$0xf]
        %v232 = vld [vmem:[%s196 + $0xc] sm:$0xf]
        %v233 = vld [vmem:[%s196 + $0x10] sm:$0xf]
        %v234 = vld [vmem:[%s196 + $0x14] sm:$0xf]
        %v241 = vunpack.c.l.b16 %v229
        %v242 = vunpack.c.l.b16 %v230
        %v243 = vunpack.c.l.b16 %v231
        %v244 = vunpack.c.l.b16 %v232
        %v245 = vunpack.c.l.b16 %v233
        %v246 = vunpack.c.l.b16 %v234
        %v247 = vpack.c.b16 %v242, %v241
        %v248 = vpack.c.b16 %v244, %v243
        %v249 = vpack.c.b16 %v246, %v245
        %vm253 = vcmask 392192
        %v255 = vsel %vm253, %v228, 0
        %257 = vmatpush.bf16.msra.mxu0 0
        %258 = vmatpush.bf16.msra.mxu0 0
        %259 = vmatpush.bf16.msra.mxu0 0
        %260 = vmatpush.bf16.msra.mxu0 0
        %261 = vmatpush.bf16.msra.mxu0 0
        %262 = vmatpush.bf16.msra.mxu0 %v249
        %263 = vmatpush.bf16.msra.mxu0 %v248
        %264 = vmatpush.bf16.msra.mxu0 %v247
        %265 = vmatmul.bf16.gmra.mxu0 %v255
        %v266 = vpop.f32.mrf.mxu0
        %v267 = vadd.f32 0.0, %v266
        %v268 = vpop.f32.mrf.mxu0
        %269 = vdwg.mxu0
        %270 = vst [vmem:[%s222] sm:$0xff] %v267
        %p271 = scmp.eq.s32.totalorder %s23, 0
        // Predicated region
        $region37: #{tpu_custom_call.1} parent=27 // pred_check
          %p272 = pneg %p271
        $region38: #{tpu_custom_call.1} parent=27 // pred_check_branch
          %274 = sbr.rel (%p272) target = $region40
        $region39: #{tpu_custom_call.1} parent=27 // pred_region
          %vm275 = vcmask 7168
          %276 = vst.msk [vmem:[%s3] sm:$0xff] %vm275, 0.0
          %277 = vst.msk [vmem:[%s4] sm:$0xff] %vm275, 0.0
        $region40: #{tpu_custom_call.1} parent=27 // pred_fallthru
          _
        %v278 = vld [vmem:[%s3] sm:$0xff]
        %279 = vadd.xlane.f32.xlu0 %v267
        %v280 = vpop.xlane.xlu0 %279
        %v281 = vadd.f32 %v278, %v280
        %vm282 = vcmask 7168
        %283 = vst.msk [vmem:[%s3] sm:$0xff] %vm282, %v281
        %v284 = vld [vmem:[%s4] sm:$0xff]
        %v285 = vmul.f32 %v267, %v267
        %286 = vadd.xlane.f32.xlu0 %v285
        %v287 = vpop.xlane.xlu0 %286
        %v288 = vadd.f32 %v284, %v287
        %289 = vst.msk [vmem:[%s4] sm:$0xff] %vm282, %v288
        %s290 = sand.u32 %s78, 1
        %s291 = scalar_lea.sflag [#allocation4], %s290
        %s292 = sand.u32 %s78, 1
        %s293 = smul.addr %s292, 8
        %s294 = scalar_lea.vmem [#allocation7], %s293
        // Predicated region
        $region41: #{tpu_custom_call.1} parent=27 // pred_check
          %p295 = pneg %p88
        $region42: #{tpu_custom_call.1} parent=27 // pred_check_branch
          %297 = sbr.rel (%p295) target = $region44
        $region43: #{tpu_custom_call.1} parent=27 // pred_region
          %299 = vsyncadd %s291, 0
          %s300 = smul.addr %s23, 8
          %s301 = scalar_lea.hbm %s2, %s300
          %s303 = sshll.u32 %s294, 4
          %s304 = int_to_ptr.vmem [resolvable:$true] %s303
          %s305 = sshll.u32 %s301, 4
          %s306 = int_to_ptr.hbm [resolvable:$true] %s305
          %308 = dma.vmem_to_hbm [thread:$0]  %s304, 128, %s306, %s291
        $region44: #{tpu_custom_call.1} parent=27 // pred_fallthru
          _
        // Predicated region
        $region45: #{tpu_custom_call.1} parent=27 // pred_check
          %p309 = pneg %p109
        $region46: #{tpu_custom_call.1} parent=27 // pred_check_branch
          %311 = sbr.rel (%p309) target = $region48
        $region47: #{tpu_custom_call.1} parent=27 // pred_region
          _
        $region48: #{tpu_custom_call.1} parent=27 // pred_fallthru
          _
        // Predicated region
        $region49: #{tpu_custom_call.1} parent=27 // pred_check
          %p312 = pneg %p130
        $region50: #{tpu_custom_call.1} parent=27 // pred_check_branch
          %314 = sbr.rel (%p312) target = $region52
        $region51: #{tpu_custom_call.1} parent=27 // pred_region
          _
        $region52: #{tpu_custom_call.1} parent=27 // pred_fallthru
          _
        // Predicated region
        $region53: #{tpu_custom_call.1} parent=27 // pred_check
          %p315 = pneg %p109
        $region54: #{tpu_custom_call.1} parent=27 // pred_check_branch
          %317 = sbr.rel (%p315) target = $region56
        $region55: #{tpu_custom_call.1} parent=27 // pred_region
          _
        $region56: #{tpu_custom_call.1} parent=27 // pred_fallthru
          _
        // Predicated region
        $region57: #{tpu_custom_call.1} parent=27 // pred_check
          %p318 = pneg %p130
        $region58: #{tpu_custom_call.1} parent=27 // pred_check_branch
          %320 = sbr.rel (%p318) target = $region60
        $region59: #{tpu_custom_call.1} parent=27 // pred_region
          _
        $region60: #{tpu_custom_call.1} parent=27 // pred_fallthru
          _
      $region28: #{tpu_custom_call.1} parent=5 // pred_fallthru
        _
      %p321 = scmp.le.s32.totalorder 2, %s18
      // Predicated region
      $region61: #{tpu_custom_call.1} parent=5 // pred_check
        %p322 = pneg %p321
      $region62: #{tpu_custom_call.1} parent=5 // pred_check_branch
        %324 = sbr.rel (%p322) target = $region64
      $region63: #{tpu_custom_call.1} parent=5 // pred_region
        %s325 = ssub.s32 %s18, 2
        // Predicated region
        $region65: #{tpu_custom_call.1} parent=63 // pred_check
          %p326 = pneg %p94
        $region66: #{tpu_custom_call.1} parent=63 // pred_check_branch
          %328 = sbr.rel (%p326) target = $region68
        $region67: #{tpu_custom_call.1} parent=63 // pred_region
          %s329 = sand.u32 %s79, 1
          %s330 = scalar_lea.sflag [#allocation4], %s329
          %s331 = sand.u32 %s79, 1
          %s332 = smul.addr %s331, 8
          %s333 = scalar_lea.vmem [#allocation7], %s332
          %335 = dma.done %s330, 128
        $region68: #{tpu_custom_call.1} parent=63 // pred_fallthru
          _
      $region64: #{tpu_custom_call.1} parent=5 // pred_fallthru
        _
    $region6: #{tpu_custom_call.1} parent=1 // loop_footer
      %s22 = sadd.s32 1, %s18
    $region7: #{tpu_custom_call.1} parent=1 // loop_footer_branch
      %17 = sbr.rel target = $region3
    $region8: #{tpu_custom_call.1} parent=1 // loop_exit
      _
    %336 = vsyncpa [#allocation3], 1
    %s337 = scalar_lea.sflag [#allocation3], 1
    %338 = vsyncpa %s337, 1
    %339 = vsyncpa [#allocation6], 1
    %340 = vsyncpa [#allocation4], 1
    %s341 = scalar_lea.sflag [#allocation4], 1
    %342 = vsyncpa %s341, 1

</llo_original>
